<compile_context>
chip_gen: v6e
topology: v6e:2x2x1
jax: 0.10.0
libtpu: 0.0.40
codegen_flags: <defaults>
</compile_context>

<pallas_src>
import math

import numpy as np

import jax
import jax.numpy as jnp
from jax import lax
from jax.experimental import pallas as pl
from jax.experimental.pallas import tpu as pltpu


def _round_up(v, m):
    return ((v + m - 1) // m) * m


def _vmem_budget_bytes():
    """~60% of physical VMEM (v5e/v6e ~76 MiB, v7x ~38 MiB); v7x-safe fallback."""
    try:
        cap = getattr(pltpu.get_tpu_info(), "vmem_capacity_bytes", None)
        if cap:
            return int(cap * 0.6)
    except Exception:
        pass
    return 38 * 1024 * 1024


def _tile_caps(in_itemsize, budget_bytes):
    """Largest (tm, tn, tk) caps whose double-buffered footprint fits the budget."""
    for tm, tn, tk in ((512, 1024, 2048), (512, 512, 2048), (512, 512, 1024),
                       (256, 512, 1024), (256, 256, 1024), (256, 256, 512),
                       (128, 256, 512)):
        footprint = (2 * (tm * tk + tn * tk) * in_itemsize   # x & w blocks, 2-deep
                     + 2 * tm * tn * 4                       # out blocks, 2-deep
                     + tm * tn * 4                           # f32 accumulator
                     + 2 * tn * 4)                           # bias blocks
        if footprint <= 0.75 * budget_bytes:
            return tm, tn, tk
    return 128, 128, 512


def _pick_tile(dim, align, cap):
    """(tile, padded_dim): tile is an align-multiple <= cap, padded_dim a tile-multiple."""
    d = _round_up(max(int(dim), 1), align)
    if d <= cap:
        return d, d
    t = (cap // align) * align
    while t >= align:                   # prefer an exact divisor: zero padding waste
        if d % t == 0 and 4 * t >= cap:
            return t, d
        t -= align
    t = (cap // align) * align
    return t, _round_up(d, t)


def _choose(dim, align, cap, override):
    if override is not None:
        t = _round_up(int(override), align)
        return t, _round_up(_round_up(max(int(dim), 1), align), t)
    return _pick_tile(dim, align, cap)


def _pad2d(a, rows, cols):
    pr, pc = rows - a.shape[0], cols - a.shape[1]
    if pr == 0 and pc == 0:
        return a
    return jnp.pad(a, ((0, pr), (0, pc)))


# ---------------------------------------------------------------------------
# Kernels
# ---------------------------------------------------------------------------
def _softplus_tile(scal_ref, w):
    """pos_w = log1p(exp(beta*w)) / beta, thresholded (== w for beta*w > 20 to f32 eps,
    which also keeps exp() from overflowing where the raw torch formula would)."""
    beta, inv_beta = scal_ref[0], scal_ref[1]
    z = beta * w
    soft = jnp.log1p(jnp.exp(jnp.minimum(z, 20.0))) * inv_beta
    return jnp.where(z > 20.0, w, soft)


def _softplus_weight_kernel(scal_ref, w_ref, o_ref):
    """Pass 1 (two-pass path): element-wise positivization of the (N, K) weight."""
    o_ref[...] = _softplus_tile(scal_ref, w_ref[...]).astype(o_ref.dtype)


def _matmul_bias_kernel(x_ref, w_ref, b_ref, o_ref, acc_ref):
    """Pass 2: o[i,j] = sum_k x[i,k] * pos_w[j,k] + b[j]   (weight in (N, K) layout)."""
    kstep = pl.program_id(2)

    @pl.when(kstep == 0)
    def _():                     # init acc with the bias: finalize is a pure cast/store
        acc_ref[...] = jnp.broadcast_to(b_ref[...], acc_ref.shape)

    acc_ref[...] += lax.dot_general(
        x_ref[...], w_ref[...],
        dimension_numbers=(((1,), (1,)), ((), ())),      # x @ w.T
        preferred_element_type=jnp.float32)

    @pl.when(kstep == pl.num_programs(2) - 1)
    def _():
        o_ref[...] = acc_ref[...].astype(o_ref.dtype)


def _make_fused_kernel(mxu_dtype):
    """Single-pass kernel: softplus (EUP) + matmul (MXU) + bias; no pos_w HBM round-trip."""
    def kernel(scal_ref, x_ref, w_ref, b_ref, o_ref, acc_ref):
        kstep = pl.program_id(2)

        @pl.when(kstep == 0)
        def _():
            acc_ref[...] = jnp.broadcast_to(b_ref[...], acc_ref.shape)

        pos_w = _softplus_tile(scal_ref, w_ref[...]).astype(mxu_dtype)
        acc_ref[...] += lax.dot_general(
            x_ref[...], pos_w,
            dimension_numbers=(((1,), (1,)), ((), ())),
            preferred_element_type=jnp.float32)

        @pl.when(kstep == pl.num_programs(2) - 1)
        def _():
            o_ref[...] = acc_ref[...].astype(o_ref.dtype)
    return kernel


# ---------------------------------------------------------------------------
# Wrapper
# ---------------------------------------------------------------------------
def linear_pos_weights(x, weight, bias, alpha, *, allow_bf16=False,
                       tm=None, tn=None, tk=None):
    """x: (..., K); weight: (N, K) torch layout; bias: (N,); alpha: scalar."""
    orig_dtype = x.dtype
    *lead, k_in = x.shape
    n_out = weight.shape[0]
    m = int(math.prod(lead)) if lead else 1

    mxu_dtype = jnp.bfloat16 if allow_bf16 else jnp.float32
    x_bytes = 2 if allow_bf16 else 4
    o_bytes = np.dtype(orig_dtype).itemsize

    x2d = x.reshape(m, k_in).astype(mxu_dtype)
    w2d = weight.astype(jnp.float32)                     # native (N, K); no transpose
    b2d = bias.astype(jnp.float32).reshape(1, n_out)

    beta = jnp.square(jnp.asarray(alpha, jnp.float32))
    scalars = jnp.stack([beta, 1.0 / beta])              # SMEM: [beta, 1/beta]

    budget = _vmem_budget_bytes()
    tm_cap, tn_cap, tk_cap = _tile_caps(x_bytes, budget)
    tm_, m_pad = _choose(m, 8, tm_cap, tm)
    tn_, n_pad = _choose(n_out, 128, tn_cap, tn)
    tk_, k_pad = _choose(k_in, 128, tk_cap, tk)

    # v7x has 2 TensorCores: give the 'parallel' axes >= 2 tiles when the whole
    # output would otherwise be a single tile.
    if (m_pad // tm_) * (n_pad // tn_) == 1 and tn_ >= 256:
        tn_ //= 2
    grid_m, grid_n, grid_k = m_pad // tm_, n_pad // tn_, k_pad // tk_

    # Zero padding is safe: padded K columns of x are 0 (kill any pos_w value
    # there); padded M rows / N columns are sliced off below.
    x_p = _pad2d(x2d, m_pad, k_pad)
    w_p = _pad2d(w2d, n_pad, k_pad)
    b_p = _pad2d(b2d, 1, n_pad)

    smem_spec = pl.BlockSpec(memory_space=pltpu.MemorySpace.SMEM)
    x_spec = pl.BlockSpec((tm_, tk_), lambda i, j, k: (i, k))
    w_spec = pl.BlockSpec((tn_, tk_), lambda i, j, k: (j, k))
    b_spec = pl.BlockSpec((1, tn_), lambda i, j, k: (0, j))
    o_spec = pl.BlockSpec((tm_, tn_), lambda i, j, k: (i, j))
    # TODO(synk): if a profile shows exposed DMA at small tk, add
    # pipeline_mode=pl.Buffered(3) on x_spec / w_spec.
    mm_params = pltpu.CompilerParams(
        dimension_semantics=("parallel", "parallel", "arbitrary"),
        vmem_limit_bytes=budget)
    mm_out = jax.ShapeDtypeStruct((m_pad, n_pad), orig_dtype)
    acc_scratch = [pltpu.VMEM((tm_, tn_), jnp.float32)]

    if grid_m == 1:
        # Fused path (small-batch / inference): softplus hides under MXU + DMA.
        out_p = pl.pallas_call(
            _make_fused_kernel(mxu_dtype),
            out_shape=mm_out,
            grid=(grid_m, grid_n, grid_k),
            in_specs=[smem_spec, x_spec, w_spec, b_spec],
            out_specs=o_spec,
            scratch_shapes=acc_scratch,
            compiler_params=mm_params,
            cost_estimate=pl.CostEstimate(
                flops=2 * m_pad * n_pad * k_pad + 4 * n_pad * k_pad,
                transcendentals=2 * n_pad * k_pad,
                bytes_accessed=(grid_n * m_pad * k_pad * x_bytes
                                + n_pad * k_pad * 4
                                + m_pad * n_pad * o_bytes)),
        )(scalars, x_p, w_p, b_p)
    else:
        # Two-pass path: positivize the weight exactly once, then tiled matmul.
        tn1 = tn_ if tn_ <= 512 else tn_ // 2      # Pass-1 tiles: HBM-bound, keep modest
        tk1 = tk_ if tk_ <= 1024 else tk_ // 2
        pos_w = pl.pallas_call(
            _softplus_weight_kernel,
            out_shape=jax.ShapeDtypeStruct((n_pad, k_pad), mxu_dtype),
            grid=(n_pad // tn1, k_pad // tk1),
            in_specs=[smem_spec, pl.BlockSpec((tn1, tk1), lambda i, j: (i, j))],
            out_specs=pl.BlockSpec((tn1, tk1), lambda i, j: (i, j)),
            compiler_params=pltpu.CompilerParams(
                dimension_semantics=("parallel", "parallel"),
                vmem_limit_bytes=budget),
            cost_estimate=pl.CostEstimate(
                flops=4 * n_pad * k_pad,
                transcendentals=2 * n_pad * k_pad,
                bytes_accessed=n_pad * k_pad * (4 + x_bytes)),
        )(scalars, w_p)

        out_p = pl.pallas_call(
            _matmul_bias_kernel,
            out_shape=mm_out,
            grid=(grid_m, grid_n, grid_k),
            in_specs=[x_spec, w_spec, b_spec],
            out_specs=o_spec,
            scratch_shapes=acc_scratch,
            compiler_params=mm_params,
            cost_estimate=pl.CostEstimate(
                flops=2 * m_pad * n_pad * k_pad,
                transcendentals=0,
                bytes_accessed=(grid_n * m_pad * k_pad * x_bytes
                                + grid_m * n_pad * k_pad * x_bytes
                                + m_pad * n_pad * o_bytes)),
        )(x_p, pos_w, b_p)

    out = out_p[:m, :n_out]
    return out.reshape(*lead, n_out)


def init_params(key, in_features, out_features):
    """Matches LinearPosWeights.reset_parameters(): kaiming_uniform_(a=sqrt(5)) on the
    (N, K) weight -> U(-1/sqrt(K), 1/sqrt(K)); bias -> U(-1/sqrt(K), 1/sqrt(K))."""
    kw, kb = jax.random.split(key)
    bound = 1.0 / math.sqrt(in_features)
    weight = jax.random.uniform(
        kw, (out_features, in_features), jnp.float32, -bound, bound)
    bias = jax.random.uniform(kb, (out_features,), jnp.float32, -bound, bound)
    alpha = jnp.float32(15.0)  # softplus alpha_init
    return weight, bias, alpha


if __name__ == "__main__":
    def reference(x, weight, bias, alpha):
        # float64 numpy reference of the torch semantics (exact formula is safe
        # here: beta*|w| <= 225/sqrt(K) << overflow threshold).
        x64 = np.asarray(x, np.float64)
        w64 = np.asarray(weight, np.float64)
        b64 = np.asarray(bias, np.float64)
        beta = float(alpha) ** 2
        pos_w = np.log1p(np.exp(beta * w64)) / beta
        return x64 @ pos_w.T + b64

    key = jax.random.PRNGKey(0)

    # --- test 1: fused single-M-tile path (the common small-batch case) -------
    in_f, out_f, batch = 32, 16, (2, 8)
    k1, k2, key = jax.random.split(key, 3)
    x1 = jax.random.normal(k1, batch + (in_f,), jnp.float32)
    w1, b1, a1 = init_params(k2, in_f, out_f)
    y1 = jax.block_until_ready(linear_pos_weights(x1, w1, b1, a1))
    assert y1.shape == batch + (out_f,) and y1.dtype == jnp.float32
    assert np.allclose(np.asarray(y1, np.float64), reference(x1, w1, b1, a1),
                       rtol=2e-2, atol=2e-2)

    # --- test 2: two-pass path + non-(8,128)-aligned dims (padding/slicing) ---
    in_f, out_f, batch = 40, 24, (3, 5)
    k1, k2, key = jax.random.split(key, 3)
    x2 = jax.random.normal(k1, batch + (in_f,), jnp.float32)
    w2, b2, a2 = init_params(k2, in_f, out_f)
    y2 = jax.block_until_ready(
        linear_pos_weights(x2, w2, b2, a2, tm=8))     # force >1 M tile -> two-pass
    assert y2.shape == batch + (out_f,)
    assert np.allclose(np.asarray(y2, np.float64), reference(x2, w2, b2, a2),
                       rtol=2e-2, atol=2e-2)

    # --- test 3: opt-in bf16 MXU path (deliberate numerics change) ------------
    y3 = jax.block_until_ready(linear_pos_weights(x1, w1, b1, a1, allow_bf16=True))
    assert y3.shape == y1.shape
    assert np.allclose(np.asarray(y3, np.float64), reference(x1, w1, b1, a1),
                       rtol=1e-1, atol=1e-1)

    print("KERNEL_OK")
</pallas_src>

<mosaic_0001>
module attributes {stable_mosaic.version = 11 : i64} {
  func.func @kernel(%arg0: i32, %arg1: i32, %arg2: i32, %arg3: memref<2xf32, #tpu.memory_space<smem>>, %arg4: memref<16x128xf32, #tpu.memory_space<vmem>>, %arg5: memref<128x128xf32, #tpu.memory_space<vmem>>, %arg6: memref<1x128xf32, #tpu.memory_space<vmem>>, %arg7: memref<16x128xf32, #tpu.memory_space<vmem>>, %arg8: memref<16x128xf32, #tpu.memory_space<vmem>>) attributes {dimension_semantics = [#tpu.dimension_semantics<parallel>, #tpu.dimension_semantics<parallel>, #tpu.dimension_semantics<arbitrary>], iteration_bounds = array<i64: 1, 1, 1>, scalar_prefetch = 0 : i64, scratch_operands = 1 : i64, tpu.core_type = #tpu.core_type<tc>, window_params = [{transform_indices = @transform_0, window_bounds = array<i64: 2>}, {transform_indices = @transform_1, window_bounds = array<i64: 16, 128>}, {transform_indices = @transform_2, window_bounds = array<i64: 128, 128>}, {transform_indices = @transform_3, window_bounds = array<i64: 1, 128>}, {transform_indices = @transform_4, window_bounds = array<i64: 16, 128>}]} {
    %c0_i32 = arith.constant 0 : i32
    %0 = arith.cmpi eq, %arg2, %c0_i32 : i32
    %1 = arith.extui %0 : i1 to i32
    %c0_i32_0 = arith.constant 0 : i32
    %2 = arith.cmpi ne, %1, %c0_i32_0 : i32
    scf.if %2 {
      %c0_13 = arith.constant 0 : index
      %c0_14 = arith.constant 0 : index
      %25 = vector.load %arg6[%c0_13, %c0_14] : memref<1x128xf32, #tpu.memory_space<vmem>>, vector<1x128xf32>
      %26 = vector.shape_cast %25 : vector<1x128xf32> to vector<1x128xf32>
      %27 = vector.broadcast %26 : vector<1x128xf32> to vector<16x128xf32>
      %c0_15 = arith.constant 0 : index
      %c0_16 = arith.constant 0 : index
      %28 = vector.load %arg8[%c0_15, %c0_16] : memref<16x128xf32, #tpu.memory_space<vmem>>, vector<16x128xf32>
      tpu.vector_store %arg8[%c0_15, %c0_16], %27 {strides = array<i32>} : memref<16x128xf32, #tpu.memory_space<vmem>>, vector<16x128xf32>,
    } else {
    }
    %c0 = arith.constant 0 : index
    %c0_1 = arith.constant 0 : index
    %3 = vector.load %arg5[%c0, %c0_1] : memref<128x128xf32, #tpu.memory_space<vmem>>, vector<128x128xf32>
    %c0_2 = arith.constant 0 : index
    %4 = memref.load %arg3[%c0_2] : memref<2xf32, #tpu.memory_space<smem>>
    %c1 = arith.constant 1 : index
    %5 = memref.load %arg3[%c1] : memref<2xf32, #tpu.memory_space<smem>>
    %6 = vector.broadcast %4 : f32 to vector<128x128xf32>
    %7 = arith.mulf %6, %3 : vector<128x128xf32>
    %cst = arith.constant 2.000000e+01 : f32
    %8 = vector.broadcast %cst : f32 to vector<128x128xf32>
    %9 = arith.minimumf %7, %8 : vector<128x128xf32>
    %10 = math.exp %9 : vector<128x128xf32>
    %11 = math.log1p %10 : vector<128x128xf32>
    %12 = vector.broadcast %5 : f32 to vector<128x128xf32>
    %13 = arith.mulf %11, %12 : vector<128x128xf32>
    %cst_3 = arith.constant 2.000000e+01 : f32
    %14 = vector.broadcast %cst_3 : f32 to vector<128x128xf32>
    %15 = arith.cmpf ogt, %7, %14 : vector<128x128xf32>
    %16 = arith.select %15, %3, %13 : vector<128x128xi1>, vector<128x128xf32>
    %c0_4 = arith.constant 0 : index
    %c0_5 = arith.constant 0 : index
    %17 = vector.load %arg8[%c0_4, %c0_5] : memref<16x128xf32, #tpu.memory_space<vmem>>, vector<16x128xf32>
    %c0_6 = arith.constant 0 : index
    %c0_7 = arith.constant 0 : index
    %18 = vector.load %arg4[%c0_6, %c0_7] : memref<16x128xf32, #tpu.memory_space<vmem>>, vector<16x128xf32>
    %cst_8 = arith.constant dense<0.000000e+00> : vector<16x128xf32>
    %19 = tpu.matmul %18, %16, %cst_8 {dimension_numbers = #tpu.dot_dimension_numbers<[1], [1], [0], [0], [0, 0, 1, 0], [], []>} : vector<16x128xf32>, vector<128x128xf32>, vector<16x128xf32> -> vector<16x128xf32>
    %20 = arith.addf %17, %19 : vector<16x128xf32>
    %c0_9 = arith.constant 0 : index
    %c0_10 = arith.constant 0 : index
    %21 = vector.load %arg8[%c0_9, %c0_10] : memref<16x128xf32, #tpu.memory_space<vmem>>, vector<16x128xf32>
    tpu.vector_store %arg8[%c0_9, %c0_10], %20 {strides = array<i32>} : memref<16x128xf32, #tpu.memory_space<vmem>>, vector<16x128xf32>,
    %c0_i32_11 = arith.constant 0 : i32
    %22 = arith.cmpi eq, %arg2, %c0_i32_11 : i32
    %23 = arith.extui %22 : i1 to i32
    %c0_i32_12 = arith.constant 0 : i32
    %24 = arith.cmpi ne, %23, %c0_i32_12 : i32
    scf.if %24 {
      %c0_13 = arith.constant 0 : index
      %c0_14 = arith.constant 0 : index
      %25 = vector.load %arg8[%c0_13, %c0_14] : memref<16x128xf32, #tpu.memory_space<vmem>>, vector<16x128xf32>
      %c0_15 = arith.constant 0 : index
      %c0_16 = arith.constant 0 : index
      %26 = vector.load %arg7[%c0_15, %c0_16] : memref<16x128xf32, #tpu.memory_space<vmem>>, vector<16x128xf32>
      tpu.vector_store %arg7[%c0_15, %c0_16], %25 {strides = array<i32>} : memref<16x128xf32, #tpu.memory_space<vmem>>, vector<16x128xf32>,
    } else {
    }
    return
  }
  func.func @transform_0(%arg0: i32, %arg1: i32, %arg2: i32) -> i32 {
    %c0_i32 = arith.constant 0 : i32
    %c0_i32_0 = arith.constant 0 : i32
    return %c0_i32 : i32
  }
  func.func @transform_1(%arg0: i32, %arg1: i32, %arg2: i32) -> (i32, i32) {
    %c0_i32 = arith.constant 0 : i32
    return %arg0, %arg2 : i32, i32
  }
  func.func @transform_2(%arg0: i32, %arg1: i32, %arg2: i32) -> (i32, i32) {
    %c0_i32 = arith.constant 0 : i32
    return %arg1, %arg2 : i32, i32
  }
  func.func @transform_3(%arg0: i32, %arg1: i32, %arg2: i32) -> (i32, i32) {
    %c0_i32 = arith.constant 0 : i32
    %c0_i32_0 = arith.constant 0 : i32
    return %c0_i32, %arg1 : i32, i32
  }
  func.func @transform_4(%arg0: i32, %arg1: i32, %arg2: i32) -> (i32, i32) {
    %c0_i32 = arith.constant 0 : i32
    return %arg0, %arg1 : i32, i32
  }
}

</mosaic_0001>

<llo_original>
// kernel: tpu_custom_call.1
$region0: #{tpu_custom_call.1}
  #allocation0 [shape = 'u32[]', space=smem, size = 0x4, offset = 0x4, fixed_abs, tag = 'smem constant byte address 0x4 - core index']
  #allocation1 [shape = 'u32[144,128]{1,0:T(1,128)}', space=vmem, size = 0x12000, scoped, tag = 'internal scratch']
  #allocation2 [shape = 'f32[16,128]{1,0:T(8,128)}', space=vmem, size = 0x2000, scoped, tag = 'scratch operand']
  %s0 = inlined_call_operand.hbm [shape: f32[2], index: 0, kind: input, shape index: {}]
  %s1 = inlined_call_operand.hbm [shape: f32[16,128], index: 1, kind: input, shape index: {}]
  %s2 = inlined_call_operand.hbm [shape: f32[128,128], index: 2, kind: input, shape index: {}]
  %s3 = inlined_call_operand.vmem [shape: f32[1,128], index: 3, kind: input, shape index: {}]
  %s4 = inlined_call_operand.hbm [shape: f32[16,128], index: 4, kind: output, shape index: {}]
  %s5 = sld [smem:[#allocation0]]
  $region46: #{tpu_custom_call.1} parent=0
    _
  %s7 = ssub.s32 1, %s5
  %s8 = scalar_select 0, %s7, %s5
  $region1: #{tpu_custom_call.1} parent=0
    #allocation3 [shape = 'u8[512]{0}', space=smem, size = 0x200, scoped, tag = 'input window, operand 0, single buffered']
    #allocation4 [shape = 's32[1]{0}', space=sflag, size = 0x4, scoped, tag = 'scoped memory for tpu_custom_call.1']
    #allocation5 [shape = 's32[1]{0}', space=sflag, size = 0x4, scoped, tag = 'scoped memory for tpu_custom_call.1']
    #allocation6 [shape = 's32[1]{0}', space=sflag, size = 0x4, scoped, tag = 'scoped memory for tpu_custom_call.1']
    #allocation7 [shape = 'u8[8192]{0}', space=vmem, size = 0x2000, scoped, tag = 'input window, operand 1, single buffered']
    #allocation8 [shape = 'u8[65536]{0}', space=vmem, size = 0x10000, scoped, tag = 'input window, operand 2, single buffered']
    #allocation9 [shape = 's32[1]{0}', space=sflag, size = 0x4, scoped, tag = 'scoped memory for tpu_custom_call.1']
    #allocation10 [shape = 'u8[8192]{0}', space=vmem, size = 0x2000, scoped, tag = 'output window, operand 0, single buffered']
    %9 = vsyncpa [#allocation6], 0
    %10 = vsyncpa [#allocation4], 0
    %11 = vsyncpa [#allocation9], 0
    %12 = vsyncpa [#allocation5], 0
    // Predicated region
    $region2: #{tpu_custom_call.1} parent=1 // pred_check
      _
    $region3: #{tpu_custom_call.1} parent=1 // pred_check_branch
      %14 = sbr.rel (0) target = $region5
    $region4: #{tpu_custom_call.1} parent=1 // pred_region
      %s16 = ssub.s32 16, 16
      %17 = vsyncadd [#allocation6], %s16
      %20 = dma.hbm_to_smem %s0, 16, [#allocation3], [#allocation6]
    $region5: #{tpu_custom_call.1} parent=1 // pred_fallthru
      _
    // Predicated region
    $region6: #{tpu_custom_call.1} parent=1 // pred_check
      _
    $region7: #{tpu_custom_call.1} parent=1 // pred_check_branch
      %22 = sbr.rel (0) target = $region9
    $region8: #{tpu_custom_call.1} parent=1 // pred_region
      %s24 = ssub.s32 256, 256
      %25 = vsyncadd [#allocation4], %s24
      %s26 = sshll.u32 [#allocation7], 4
      %s27 = int_to_ptr.vmem [resolvable:$true] %s26
      %32 = dma.hbm_to_vmem [thread:$0]  %s1, 256, %s27, [#allocation4], 128, 128, 8
    $region9: #{tpu_custom_call.1} parent=1 // pred_fallthru
      _
    // Predicated region
    $region10: #{tpu_custom_call.1} parent=1 // pred_check
      _
    $region11: #{tpu_custom_call.1} parent=1 // pred_check_branch
      %34 = sbr.rel (0) target = $region13
    $region12: #{tpu_custom_call.1} parent=1 // pred_region
      %s36 = ssub.s32 2048, 2048
      %37 = vsyncadd [#allocation9], %s36
      %s38 = sshll.u32 [#allocation8], 4
      %s39 = int_to_ptr.vmem [resolvable:$true] %s38
      %44 = dma.hbm_to_vmem [thread:$0]  %s2, 2048, %s39, [#allocation9], 128, 128, 8
    $region13: #{tpu_custom_call.1} parent=1 // pred_fallthru
      _
    // Predicated region
    $region14: #{tpu_custom_call.1} parent=1 // pred_check
      _
    $region15: #{tpu_custom_call.1} parent=1 // pred_check_branch
      %46 = sbr.rel (0) target = $region17
    $region16: #{tpu_custom_call.1} parent=1 // pred_region
      _
    $region17: #{tpu_custom_call.1} parent=1 // pred_fallthru
      _
    // Predicated region
    $region18: #{tpu_custom_call.1} parent=1 // pred_check
      _
    $region19: #{tpu_custom_call.1} parent=1 // pred_check_branch
      %48 = sbr.rel (0) target = $region21
    $region20: #{tpu_custom_call.1} parent=1 // pred_region
      %49 = dma.done [#allocation6], 16
    $region21: #{tpu_custom_call.1} parent=1 // pred_fallthru
      _
    // Predicated region
    $region22: #{tpu_custom_call.1} parent=1 // pred_check
      _
    $region23: #{tpu_custom_call.1} parent=1 // pred_check_branch
      %51 = sbr.rel (0) target = $region25
    $region24: #{tpu_custom_call.1} parent=1 // pred_region
      %52 = dma.done [#allocation4], 256
    $region25: #{tpu_custom_call.1} parent=1 // pred_fallthru
      _
    // Predicated region
    $region26: #{tpu_custom_call.1} parent=1 // pred_check
      _
    $region27: #{tpu_custom_call.1} parent=1 // pred_check_branch
      %54 = sbr.rel (0) target = $region29
    $region28: #{tpu_custom_call.1} parent=1 // pred_region
      %55 = dma.done [#allocation9], 2048
    $region29: #{tpu_custom_call.1} parent=1 // pred_fallthru
      _
    %56 = sfence
    %p57 = scmp.eq.s32.totalorder 0, 0
    // Predicated region
    $region30: #{tpu_custom_call.1} parent=1 // pred_check
      %p58 = pneg %p57
    $region31: #{tpu_custom_call.1} parent=1 // pred_check_branch
      %60 = sbr.rel (%p58) target = $region33
    $region32: #{tpu_custom_call.1} parent=1 // pred_region
      %v61 = vld [vmem:[%s3] sm:$0x1]
      %v63 = vlaneseq
      %v64 = vshrl.u32 %v63, 7
      %v65 = vsub.s32 0, %v64
      %v66 = vrot.slane %v61, %v65
      %68 = vst [vmem:[#allocation2] sm:$0xff] %v66
      %69 = vst [vmem:[#allocation2 + $0x8] sm:$0xff] %v66
    $region33: #{tpu_custom_call.1} parent=1 // pred_fallthru
      _
    %v70 = vld [vmem:[#allocation8] sm:$0xff]
    %v71 = vld [vmem:[#allocation8 + $0x8] sm:$0xff]
    %v72 = vld [vmem:[#allocation8 + $0x10] sm:$0xff]
    %v73 = vld [vmem:[#allocation8 + $0x18] sm:$0xff]
    %v74 = vld [vmem:[#allocation8 + $0x20] sm:$0xff]
    %v75 = vld [vmem:[#allocation8 + $0x28] sm:$0xff]
    %v76 = vld [vmem:[#allocation8 + $0x30] sm:$0xff]
    %v77 = vld [vmem:[#allocation8 + $0x38] sm:$0xff]
    %v78 = vld [vmem:[#allocation8 + $0x40] sm:$0xff]
    %v79 = vld [vmem:[#allocation8 + $0x48] sm:$0xff]
    %v80 = vld [vmem:[#allocation8 + $0x50] sm:$0xff]
    %v81 = vld [vmem:[#allocation8 + $0x58] sm:$0xff]
    %v82 = vld [vmem:[#allocation8 + $0x60] sm:$0xff]
    %v83 = vld [vmem:[#allocation8 + $0x68] sm:$0xff]
    %v84 = vld [vmem:[#allocation8 + $0x70] sm:$0xff]
    %v85 = vld [vmem:[#allocation8 + $0x78] sm:$0xff]
    %s86 = sld [smem:[#allocation3]]
    %s87 = sld [smem:[#allocation3 + $0x1]]
    %v88 = vstv %s86
    %v89 = vmul.f32 %v88, %v70
    %v90 = vmul.f32 %v88, %v71
    %v91 = vmul.f32 %v88, %v72
    %v92 = vmul.f32 %v88, %v73
    %v93 = vmul.f32 %v88, %v74
    %v94 = vmul.f32 %v88, %v75
    %v95 = vmul.f32 %v88, %v76
    %v96 = vmul.f32 %v88, %v77
    %v97 = vmul.f32 %v88, %v78
    %v98 = vmul.f32 %v88, %v79
    %v99 = vmul.f32 %v88, %v80
    %v100 = vmul.f32 %v88, %v81
    %v101 = vmul.f32 %v88, %v82
    %v102 = vmul.f32 %v88, %v83
    %v103 = vmul.f32 %v88, %v84
    %v104 = vmul.f32 %v88, %v85
    %v105 = vmin.f32 %v89, 20.0
    %v106 = vmin.f32 %v90, 20.0
    %v107 = vmin.f32 %v91, 20.0
    %v108 = vmin.f32 %v92, 20.0
    %v109 = vmin.f32 %v93, 20.0
    %v110 = vmin.f32 %v94, 20.0
    %v111 = vmin.f32 %v95, 20.0
    %v112 = vmin.f32 %v96, 20.0
    %v113 = vmin.f32 %v97, 20.0
    %v114 = vmin.f32 %v98, 20.0
    %v115 = vmin.f32 %v99, 20.0
    %v116 = vmin.f32 %v100, 20.0
    %v117 = vmin.f32 %v101, 20.0
    %v118 = vmin.f32 %v102, 20.0
    %v119 = vmin.f32 %v103, 20.0
    %v120 = vmin.f32 %v104, 20.0
    %v121 = vmul.f32 %v105, 1.442695
    %v122 = vpow.pop %v121
    %v123 = vmul.f32 %v106, 1.442695
    %v124 = vpow.pop %v123
    %v125 = vmul.f32 %v107, 1.442695
    %v126 = vpow.pop %v125
    %v127 = vmul.f32 %v108, 1.442695
    %v128 = vpow.pop %v127
    %v129 = vmul.f32 %v109, 1.442695
    %v130 = vpow.pop %v129
    %v131 = vmul.f32 %v110, 1.442695
    %v132 = vpow.pop %v131
    %v133 = vmul.f32 %v111, 1.442695
    %v134 = vpow.pop %v133
    %v135 = vmul.f32 %v112, 1.442695
    %v136 = vpow.pop %v135
    %v137 = vmul.f32 %v113, 1.442695
    %v138 = vpow.pop %v137
    %v139 = vmul.f32 %v114, 1.442695
    %v140 = vpow.pop %v139
    %v141 = vmul.f32 %v115, 1.442695
    %v142 = vpow.pop %v141
    %v143 = vmul.f32 %v116, 1.442695
    %v144 = vpow.pop %v143
    %v145 = vmul.f32 %v117, 1.442695
    %v146 = vpow.pop %v145
    %v147 = vmul.f32 %v118, 1.442695
    %v148 = vpow.pop %v147
    %v149 = vmul.f32 %v119, 1.442695
    %v150 = vpow.pop %v149
    %v151 = vmul.f32 %v120, 1.442695
    %v152 = vpow.pop %v151
    %v153 = vadd.f32 %v122, 1.0
    %v154 = vlog2.pop %v153
    %v155 = vmul.f32 %v154, 0.6931472
    %v156 = vmul.f32 -0.5, %v122
    %v157 = vadd.f32 %v156, 1.0
    %v158 = vmul.f32 %v157, %v122
    %v159 = vand.u32 2147483647, %v122
    %vm160 = vcmp.lt.f32.partialorder %v159, 0.0004427343
    %v161 = vsel %vm160, %v158, %v155
    %v162 = vadd.f32 %v124, 1.0
    %v163 = vlog2.pop %v162
    %v164 = vmul.f32 %v163, 0.6931472
    %v165 = vmul.f32 -0.5, %v124
    %v166 = vadd.f32 %v165, 1.0
    %v167 = vmul.f32 %v166, %v124
    %v168 = vand.u32 2147483647, %v124
    %vm169 = vcmp.lt.f32.partialorder %v168, 0.0004427343
    %v170 = vsel %vm169, %v167, %v164
    %v171 = vadd.f32 %v126, 1.0
    %v172 = vlog2.pop %v171
    %v173 = vmul.f32 %v172, 0.6931472
    %v174 = vmul.f32 -0.5, %v126
    %v175 = vadd.f32 %v174, 1.0
    %v176 = vmul.f32 %v175, %v126
    %v177 = vand.u32 2147483647, %v126
    %vm178 = vcmp.lt.f32.partialorder %v177, 0.0004427343
    %v179 = vsel %vm178, %v176, %v173
    %v180 = vadd.f32 %v128, 1.0
    %v181 = vlog2.pop %v180
    %v182 = vmul.f32 %v181, 0.6931472
    %v183 = vmul.f32 -0.5, %v128
    %v184 = vadd.f32 %v183, 1.0
    %v185 = vmul.f32 %v184, %v128
    %v186 = vand.u32 2147483647, %v128
    %vm187 = vcmp.lt.f32.partialorder %v186, 0.0004427343
    %v188 = vsel %vm187, %v185, %v182
    %v189 = vadd.f32 %v130, 1.0
    %v190 = vlog2.pop %v189
    %v191 = vmul.f32 %v190, 0.6931472
    %v192 = vmul.f32 -0.5, %v130
    %v193 = vadd.f32 %v192, 1.0
    %v194 = vmul.f32 %v193, %v130
    %v195 = vand.u32 2147483647, %v130
    %vm196 = vcmp.lt.f32.partialorder %v195, 0.0004427343
    %v197 = vsel %vm196, %v194, %v191
    %v198 = vadd.f32 %v132, 1.0
    %v199 = vlog2.pop %v198
    %v200 = vmul.f32 %v199, 0.6931472
    %v201 = vmul.f32 -0.5, %v132
    %v202 = vadd.f32 %v201, 1.0
    %v203 = vmul.f32 %v202, %v132
    %v204 = vand.u32 2147483647, %v132
    %vm205 = vcmp.lt.f32.partialorder %v204, 0.0004427343
    %v206 = vsel %vm205, %v203, %v200
    %v207 = vadd.f32 %v134, 1.0
    %v208 = vlog2.pop %v207
    %v209 = vmul.f32 %v208, 0.6931472
    %v210 = vmul.f32 -0.5, %v134
    %v211 = vadd.f32 %v210, 1.0
    %v212 = vmul.f32 %v211, %v134
    %v213 = vand.u32 2147483647, %v134
    %vm214 = vcmp.lt.f32.partialorder %v213, 0.0004427343
    %v215 = vsel %vm214, %v212, %v209
    %v216 = vadd.f32 %v136, 1.0
    %v217 = vlog2.pop %v216
    %v218 = vmul.f32 %v217, 0.6931472
    %v219 = vmul.f32 -0.5, %v136
    %v220 = vadd.f32 %v219, 1.0
    %v221 = vmul.f32 %v220, %v136
    %v222 = vand.u32 2147483647, %v136
    %vm223 = vcmp.lt.f32.partialorder %v222, 0.0004427343
    %v224 = vsel %vm223, %v221, %v218
    %v225 = vadd.f32 %v138, 1.0
    %v226 = vlog2.pop %v225
    %v227 = vmul.f32 %v226, 0.6931472
    %v228 = vmul.f32 -0.5, %v138
    %v229 = vadd.f32 %v228, 1.0
    %v230 = vmul.f32 %v229, %v138
    %v231 = vand.u32 2147483647, %v138
    %vm232 = vcmp.lt.f32.partialorder %v231, 0.0004427343
    %v233 = vsel %vm232, %v230, %v227
    %v234 = vadd.f32 %v140, 1.0
    %v235 = vlog2.pop %v234
    %v236 = vmul.f32 %v235, 0.6931472
    %v237 = vmul.f32 -0.5, %v140
    %v238 = vadd.f32 %v237, 1.0
    %v239 = vmul.f32 %v238, %v140
    %v240 = vand.u32 2147483647, %v140
    %vm241 = vcmp.lt.f32.partialorder %v240, 0.0004427343
    %v242 = vsel %vm241, %v239, %v236
    %v243 = vadd.f32 %v142, 1.0
    %v244 = vlog2.pop %v243
    %v245 = vmul.f32 %v244, 0.6931472
    %v246 = vmul.f32 -0.5, %v142
    %v247 = vadd.f32 %v246, 1.0
    %v248 = vmul.f32 %v247, %v142
    %v249 = vand.u32 2147483647, %v142
    %vm250 = vcmp.lt.f32.partialorder %v249, 0.0004427343
    %v251 = vsel %vm250, %v248, %v245
    %v252 = vadd.f32 %v144, 1.0
    %v253 = vlog2.pop %v252
    %v254 = vmul.f32 %v253, 0.6931472
    %v255 = vmul.f32 -0.5, %v144
    %v256 = vadd.f32 %v255, 1.0
    %v257 = vmul.f32 %v256, %v144
    %v258 = vand.u32 2147483647, %v144
    %vm259 = vcmp.lt.f32.partialorder %v258, 0.0004427343
    %v260 = vsel %vm259, %v257, %v254
    %v261 = vadd.f32 %v146, 1.0
    %v262 = vlog2.pop %v261
    %v263 = vmul.f32 %v262, 0.6931472
    %v264 = vmul.f32 -0.5, %v146
    %v265 = vadd.f32 %v264, 1.0
    %v266 = vmul.f32 %v265, %v146
    %v267 = vand.u32 2147483647, %v146
    %vm268 = vcmp.lt.f32.partialorder %v267, 0.0004427343
    %v269 = vsel %vm268, %v266, %v263
    %v270 = vadd.f32 %v148, 1.0
    %v271 = vlog2.pop %v270
    %v272 = vmul.f32 %v271, 0.6931472
    %v273 = vmul.f32 -0.5, %v148
    %v274 = vadd.f32 %v273, 1.0
    %v275 = vmul.f32 %v274, %v148
    %v276 = vand.u32 2147483647, %v148
    %vm277 = vcmp.lt.f32.partialorder %v276, 0.0004427343
    %v278 = vsel %vm277, %v275, %v272
    %v279 = vadd.f32 %v150, 1.0
    %v280 = vlog2.pop %v279
    %v281 = vmul.f32 %v280, 0.6931472
    %v282 = vmul.f32 -0.5, %v150
    %v283 = vadd.f32 %v282, 1.0
    %v284 = vmul.f32 %v283, %v150
    %v285 = vand.u32 2147483647, %v150
    %vm286 = vcmp.lt.f32.partialorder %v285, 0.0004427343
    %v287 = vsel %vm286, %v284, %v281
    %v288 = vadd.f32 %v152, 1.0
    %v289 = vlog2.pop %v288
    %v290 = vmul.f32 %v289, 0.6931472
    %v291 = vmul.f32 -0.5, %v152
    %v292 = vadd.f32 %v291, 1.0
    %v293 = vmul.f32 %v292, %v152
    %v294 = vand.u32 2147483647, %v152
    %vm295 = vcmp.lt.f32.partialorder %v294, 0.0004427343
    %v296 = vsel %vm295, %v293, %v290
    %v297 = vstv %s87
    %v298 = vmul.f32 %v161, %v297
    %v299 = vmul.f32 %v170, %v297
    %v300 = vmul.f32 %v179, %v297
    %v301 = vmul.f32 %v188, %v297
    %v302 = vmul.f32 %v197, %v297
    %v303 = vmul.f32 %v206, %v297
    %v304 = vmul.f32 %v215, %v297
    %v305 = vmul.f32 %v224, %v297
    %v306 = vmul.f32 %v233, %v297
    %v307 = vmul.f32 %v242, %v297
    %v308 = vmul.f32 %v251, %v297
    %v309 = vmul.f32 %v260, %v297
    %v310 = vmul.f32 %v269, %v297
    %v311 = vmul.f32 %v278, %v297
    %v312 = vmul.f32 %v287, %v297
    %v313 = vmul.f32 %v296, %v297
    %vm314 = vcmp.gt.f32.partialorder %v89, 20.0
    %vm315 = vcmp.gt.f32.partialorder %v90, 20.0
    %vm316 = vcmp.gt.f32.partialorder %v91, 20.0
    %vm317 = vcmp.gt.f32.partialorder %v92, 20.0
    %vm318 = vcmp.gt.f32.partialorder %v93, 20.0
    %vm319 = vcmp.gt.f32.partialorder %v94, 20.0
    %vm320 = vcmp.gt.f32.partialorder %v95, 20.0
    %vm321 = vcmp.gt.f32.partialorder %v96, 20.0
    %vm322 = vcmp.gt.f32.partialorder %v97, 20.0
    %vm323 = vcmp.gt.f32.partialorder %v98, 20.0
    %vm324 = vcmp.gt.f32.partialorder %v99, 20.0
    %vm325 = vcmp.gt.f32.partialorder %v100, 20.0
    %vm326 = vcmp.gt.f32.partialorder %v101, 20.0
    %vm327 = vcmp.gt.f32.partialorder %v102, 20.0
    %vm328 = vcmp.gt.f32.partialorder %v103, 20.0
    %vm329 = vcmp.gt.f32.partialorder %v104, 20.0
    %v330 = vsel %vm314, %v70, %v298
    %v331 = vsel %vm315, %v71, %v299
    %v332 = vsel %vm316, %v72, %v300
    %v333 = vsel %vm317, %v73, %v301
    %v334 = vsel %vm318, %v74, %v302
    %v335 = vsel %vm319, %v75, %v303
    %v336 = vsel %vm320, %v76, %v304
    %v337 = vsel %vm321, %v77, %v305
    %v338 = vsel %vm322, %v78, %v306
    %v339 = vsel %vm323, %v79, %v307
    %v340 = vsel %vm324, %v80, %v308
    %v341 = vsel %vm325, %v81, %v309
    %v342 = vsel %vm326, %v82, %v310
    %v343 = vsel %vm327, %v83, %v311
    %v344 = vsel %vm328, %v84, %v312
    %v345 = vsel %vm329, %v85, %v313
    %v346 = vld [vmem:[#allocation2] sm:$0xff]
    %v347 = vld [vmem:[#allocation2 + $0x8] sm:$0xff]
    %v348 = vld [vmem:[#allocation7] sm:$0xff]
    %v349 = vld [vmem:[#allocation7 + $0x8] sm:$0xff]
    %350 = vmatprep.subr.mxu0 0.0
    %351 = vmatpush1.xpose.msra.mxu0 %v345
    %352 = vmatprep.subr.mxu0 0.0
    %353 = vmatpush1.xpose.msra.mxu0 %v344
    %354 = vmatprep.subr.mxu0 0.0
    %355 = vmatpush1.xpose.msra.mxu0 %v343
    %356 = vmatprep.subr.mxu0 0.0
    %357 = vmatpush1.xpose.msra.mxu0 %v342
    %358 = vmatprep.subr.mxu0 0.0
    %359 = vmatpush1.xpose.msra.mxu0 %v341
    %360 = vmatprep.subr.mxu0 0.0
    %361 = vmatpush1.xpose.msra.mxu0 %v340
    %362 = vmatprep.subr.mxu0 0.0
    %363 = vmatpush1.xpose.msra.mxu0 %v339
    %364 = vmatprep.subr.mxu0 0.0
    %365 = vmatpush1.xpose.msra.mxu0 %v338
    %366 = vmatprep.subr.mxu0 0.0
    %367 = vmatpush1.xpose.msra.mxu0 %v337
    %368 = vmatprep.subr.mxu0 0.0
    %369 = vmatpush1.xpose.msra.mxu0 %v336
    %370 = vmatprep.subr.mxu0 0.0
    %371 = vmatpush1.xpose.msra.mxu0 %v335
    %372 = vmatprep.subr.mxu0 0.0
    %373 = vmatpush1.xpose.msra.mxu0 %v334
    %374 = vmatprep.subr.mxu0 0.0
    %375 = vmatpush1.xpose.msra.mxu0 %v333
    %376 = vmatprep.subr.mxu0 0.0
    %377 = vmatpush1.xpose.msra.mxu0 %v332
    %378 = vmatprep.subr.mxu0 0.0
    %379 = vmatpush1.xpose.msra.mxu0 %v331
    %380 = vmatprep.subr.mxu0 0.0
    %381 = vmatpush1.xpose.msra.mxu0 %v330
    %382 = vmatprep.subr.mxu0 0.0
    %383 = vmatpush2.xpose.msra.mxu0 0.0
    %384 = vmatprep.subr.mxu0 0.0
    %385 = vmatpush2.xpose.msra.mxu0 0.0
    %386 = vmatprep.subr.mxu0 0.0
    %387 = vmatpush2.xpose.msra.mxu0 0.0
    %388 = vmatprep.subr.mxu0 0.0
    %389 = vmatpush2.xpose.msra.mxu0 0.0
    %390 = vmatprep.subr.mxu0 0.0
    %391 = vmatpush2.xpose.msra.mxu0 0.0
    %392 = vmatprep.subr.mxu0 0.0
    %393 = vmatpush2.xpose.msra.mxu0 0.0
    %394 = vmatprep.subr.mxu0 0.0
    %395 = vmatpush2.xpose.msra.mxu0 0.0
    %396 = vmatprep.subr.mxu0 0.0
    %397 = vmatpush2.xpose.msra.mxu0 0.0
    %398 = vmatprep.subr.mxu0 0.0
    %399 = vmatpush2.xpose.msra.mxu0 0.0
    %400 = vmatprep.subr.mxu0 0.0
    %401 = vmatpush2.xpose.msra.mxu0 0.0
    %402 = vmatprep.subr.mxu0 0.0
    %403 = vmatpush2.xpose.msra.mxu0 0.0
    %404 = vmatprep.subr.mxu0 0.0
    %405 = vmatpush2.xpose.msra.mxu0 0.0
    %406 = vmatprep.subr.mxu0 0.0
    %407 = vmatpush2.xpose.msra.mxu0 0.0
    %408 = vmatprep.subr.mxu0 0.0
    %409 = vmatpush2.xpose.msra.mxu0 0.0
    %410 = vmatprep.subr.mxu0 0.0
    %411 = vmatpush2.xpose.msra.mxu0 0.0
    %412 = vmatprep.subr.mxu0 0.0
    %413 = vmatpush2.xpose.msra.mxu0 0.0
    %414 = vmatprep.mubr.f32.mxu0 0.0
    %415 = vmatmul.mubr.f32.gmra.mxu0 %v348
    %v416 = vpop.f32.mrf.mxu0
    %v417 = vadd.f32 0.0, %v416
    %v418 = vpop.f32.mrf.mxu0
    %419 = vmatprep.mubr.f32.mxu0 0.0
    %420 = vmatmul.mubr.f32.gmra.mxu0 %v349
    %v421 = vpop.f32.mrf.mxu0
    %v422 = vadd.f32 0.0, %v421
    %v423 = vpop.f32.mrf.mxu0
    %424 = vdwg.mxu0
    %v425 = vadd.f32 %v346, %v417
    %v426 = vadd.f32 %v347, %v422
    %427 = vst [vmem:[#allocation2] sm:$0xff] %v425
    %428 = vst [vmem:[#allocation2 + $0x8] sm:$0xff] %v426
    // Predicated region
    $region34: #{tpu_custom_call.1} parent=1 // pred_check
      %p429 = pneg %p57
    $region35: #{tpu_custom_call.1} parent=1 // pred_check_branch
      %431 = sbr.rel (%p429) target = $region37
    $region36: #{tpu_custom_call.1} parent=1 // pred_region
      %v432 = vld [vmem:[#allocation2] sm:$0xff]
      %v433 = vld [vmem:[#allocation2 + $0x8] sm:$0xff]
      %434 = vst [vmem:[#allocation10] sm:$0xff] %v432
      %435 = vst [vmem:[#allocation10 + $0x8] sm:$0xff] %v433
    $region37: #{tpu_custom_call.1} parent=1 // pred_fallthru
      _
    // Predicated region
    $region38: #{tpu_custom_call.1} parent=1 // pred_check
      _
    $region39: #{tpu_custom_call.1} parent=1 // pred_check_branch
      %437 = sbr.rel (0) target = $region41
    $region40: #{tpu_custom_call.1} parent=1 // pred_region
      %s439 = ssub.s32 256, 256
      %440 = vsyncadd [#allocation5], %s439
      %s441 = sshll.u32 [#allocation10], 4
      %s442 = int_to_ptr.vmem [resolvable:$true] %s441
      %447 = dma.vmem_to_hbm [thread:$0]  %s442, 256, %s4, [#allocation5], 128, 128, 8
    $region41: #{tpu_custom_call.1} parent=1 // pred_fallthru
      _
    // Predicated region
    $region42: #{tpu_custom_call.1} parent=1 // pred_check
      _
    $region43: #{tpu_custom_call.1} parent=1 // pred_check_branch
      %449 = sbr.rel (0) target = $region45
    $region44: #{tpu_custom_call.1} parent=1 // pred_region
      %450 = dma.done [#allocation5], 256
    $region45: #{tpu_custom_call.1} parent=1 // pred_fallthru
      _
    %451 = vsyncpa [#allocation4], 1
    %452 = vsyncpa [#allocation9], 1
    %453 = vsyncpa [#allocation5], 1
    %454 = vsyncpa [#allocation6], 1

</llo_original>
